<compile_context>
chip_gen: v6e
topology: v6e:2x2x1
jax: 0.10.0
libtpu: 0.0.40
codegen_flags: <defaults>
</compile_context>

<pallas_src>
import functools
import math

import jax
import jax.numpy as jnp
from jax import lax
from jax.experimental import pallas as pl
from jax.experimental.pallas import tpu as pltpu


# ----------------------------------------------------------------------------
# helpers
# ----------------------------------------------------------------------------

def _round_up(x, m):
    return ((x + m - 1) // m) * m


def _pick_k_tile(K):
    # smallest zero-padding among candidate K tiles; tie -> larger tile
    cands = (512, 256, 128)
    return min(cands, key=lambda t: (_round_up(K, t), -t))


def _row_tile(M, target=512):
    if M <= target:
        return M
    t = (target // 8) * 8
    while t >= 8:
        if M % t == 0:
            return t
        t -= 8
    return M


# ----------------------------------------------------------------------------
# Tiled bf16 MXU matmul (+ optional bias)
# ----------------------------------------------------------------------------

def _mm_kernel(x_ref, w_ref, o_ref, acc_ref):
    @pl.when(pl.program_id(2) == 0)
    def _():
        acc_ref[...] = jnp.zeros_like(acc_ref)

    acc_ref[...] += jnp.dot(x_ref[...], w_ref[...],
                            preferred_element_type=jnp.float32)

    @pl.when(pl.program_id(2) == pl.num_programs(2) - 1)
    def _():
        o_ref[...] = acc_ref[...]


def _mm_bias_kernel(x_ref, w_ref, b_ref, o_ref, acc_ref):
    @pl.when(pl.program_id(2) == 0)
    def _():
        acc_ref[...] = jnp.zeros_like(acc_ref)

    acc_ref[...] += jnp.dot(x_ref[...], w_ref[...],
                            preferred_element_type=jnp.float32)

    @pl.when(pl.program_id(2) == pl.num_programs(2) - 1)
    def _():
        o_ref[...] = acc_ref[...] + b_ref[...]


@jax.jit
def pallas_matmul(x, w, bias=None):
    """(M, K) @ (K, N) [+ bias]; bf16 MXU operands, f32 accumulation."""
    M, K = x.shape
    N = w.shape[1]
    x = x.astype(jnp.bfloat16)
    w = w.astype(jnp.bfloat16)

    tm = min(_round_up(M, 8), 256)
    tn = 128
    tk = _pick_k_tile(K)
    M_pad = _round_up(M, tm)
    N_pad = _round_up(N, tn)
    K_pad = _round_up(K, tk)

    if (M_pad, K_pad) != (M, K):
        x = jnp.pad(x, ((0, M_pad - M), (0, K_pad - K)))
    if (K_pad, N_pad) != (K, N):
        w = jnp.pad(w, ((0, K_pad - K), (0, N_pad - N)))

    grid = (M_pad // tm, N_pad // tn, K_pad // tk)
    in_specs = [
        pl.BlockSpec((tm, tk), lambda i, j, k: (i, k)),
        pl.BlockSpec((tk, tn), lambda i, j, k: (k, j)),
    ]
    args = [x, w]
    if bias is None:
        kernel = _mm_kernel
    else:
        kernel = _mm_bias_kernel
        b = bias.reshape(1, N).astype(jnp.float32)
        if N_pad != N:
            b = jnp.pad(b, ((0, 0), (0, N_pad - N)))
        in_specs.append(pl.BlockSpec((1, tn), lambda i, j, k: (0, j)))
        args.append(b)

    out = pl.pallas_call(
        kernel,
        out_shape=jax.ShapeDtypeStruct((M_pad, N_pad), jnp.float32),
        grid=grid,
        in_specs=in_specs,
        out_specs=pl.BlockSpec((tm, tn), lambda i, j, k: (i, j)),
        scratch_shapes=[pltpu.VMEM((tm, tn), jnp.float32)],
        compiler_params=pltpu.CompilerParams(
            dimension_semantics=("parallel", "parallel", "arbitrary")),
    )(*args)
    return out[:M, :N]


# ----------------------------------------------------------------------------
# Direct (im2col-free) 3x3 / stride-1 / pad-1 conv fused with BN statistics
# ----------------------------------------------------------------------------

def _conv3x3_s1_bnstats_kernel(xp_ref, w_ref, o_ref, s_ref, q_ref, *, H, W):
    x = xp_ref[0]                       # (H+2, W+2, Cin) bf16
    cin = x.shape[-1]
    tn = o_ref.shape[-1]
    acc = jnp.zeros((H * W, tn), jnp.float32)
    for ki in range(3):
        for kj in range(3):
            lhs = x[ki:ki + H, kj:kj + W, :].reshape(H * W, cin)
            acc = acc + jnp.dot(lhs, w_ref[ki * 3 + kj],
                                preferred_element_type=jnp.float32)
    o_ref[0] = acc

    # BatchNorm statistics accumulated across the batch (inner, arbitrary) axis
    @pl.when(pl.program_id(1) == 0)
    def _():
        s_ref[...] = jnp.zeros_like(s_ref)
        q_ref[...] = jnp.zeros_like(q_ref)

    s_ref[...] += jnp.sum(acc, axis=0, keepdims=True)
    q_ref[...] += jnp.sum(acc * acc, axis=0, keepdims=True)


@jax.jit
def pallas_conv3x3_s1_stats(x, w):
    """Direct 3x3 stride-1 pad-1 conv; also returns per-channel sum / sumsq."""
    B, H, W, Cin = x.shape
    Cout = w.shape[0]
    xp = jnp.pad(x, ((0, 0), (1, 1), (1, 1), (0, 0))).astype(jnp.bfloat16)
    wt = jnp.transpose(w, (2, 3, 1, 0)).reshape(9, Cin, Cout)
    wt = wt.astype(jnp.bfloat16)
    tn = 128 if Cout % 128 == 0 else Cout
    out, s, q = pl.pallas_call(
        functools.partial(_conv3x3_s1_bnstats_kernel, H=H, W=W),
        out_shape=(jax.ShapeDtypeStruct((B, H * W, Cout), jnp.float32),
                   jax.ShapeDtypeStruct((1, Cout), jnp.float32),
                   jax.ShapeDtypeStruct((1, Cout), jnp.float32)),
        grid=(Cout // tn, B),
        in_specs=[
            pl.BlockSpec((1, H + 2, W + 2, Cin), lambda n, b: (b, 0, 0, 0)),
            pl.BlockSpec((9, Cin, tn), lambda n, b: (0, 0, n)),
        ],
        out_specs=(pl.BlockSpec((1, H * W, tn), lambda n, b: (b, 0, n)),
                   pl.BlockSpec((1, tn), lambda n, b: (0, n)),
                   pl.BlockSpec((1, tn), lambda n, b: (0, n))),
        compiler_params=pltpu.CompilerParams(
            dimension_semantics=("parallel", "arbitrary")),
    )(xp, wt)
    return out.reshape(B, H, W, Cout), s, q


@functools.partial(jax.jit, static_argnames=("stride", "padding"))
def conv2d(x, w, stride=1, padding=0):
    """NHWC conv, PyTorch weight layout (Cout, Cin, KH, KW), bias=False."""
    B, H, W, C = x.shape
    Cout, Cin, KH, KW = w.shape
    if KH == 1 and KW == 1 and padding == 0:
        xd = x[:, ::stride, ::stride, :] if stride > 1 else x
        Bo, Ho, Wo, _ = xd.shape
        out = pallas_matmul(xd.reshape(Bo * Ho * Wo, Cin),
                            jnp.transpose(w.reshape(Cout, Cin), (1, 0)))
        return out.reshape(Bo, Ho, Wo, Cout)
    # Strided / large-kernel convs (7x7 s2 stem, 3x3 s2 stage heads):
    # bf16 im2col + tiled MXU matmul.
    # TODO(synk): fold the strided-tap gather into the matmul kernel too
    # (parity-phase BlockSpecs) to remove this last im2col materialization.
    Ho = (H + 2 * padding - KH) // stride + 1
    Wo = (W + 2 * padding - KW) // stride + 1
    xp = jnp.pad(x, ((0, 0), (padding, padding), (padding, padding),
                     (0, 0))).astype(jnp.bfloat16)
    patches = []
    for ki in range(KH):
        for kj in range(KW):
            patches.append(lax.slice(
                xp, (0, ki, kj, 0),
                (B, ki + (Ho - 1) * stride + 1, kj + (Wo - 1) * stride + 1, C),
                (1, stride, stride, 1)))
    p = jnp.stack(patches, axis=3).reshape(B * Ho * Wo, KH * KW * Cin)
    wm = jnp.transpose(w, (2, 3, 1, 0)).reshape(KH * KW * Cin, Cout)
    out = pallas_matmul(p, wm)
    return out.reshape(B, Ho, Wo, Cout)


# ----------------------------------------------------------------------------
# BatchNorm (training-mode batch statistics): single-pass stats + tiled apply
# ----------------------------------------------------------------------------

def _bn_stats_kernel(x_ref, s_ref, q_ref):
    @pl.when(pl.program_id(0) == 0)
    def _():
        s_ref[...] = jnp.zeros_like(s_ref)
        q_ref[...] = jnp.zeros_like(q_ref)

    x = x_ref[...]
    s_ref[...] += jnp.sum(x, axis=0, keepdims=True)
    q_ref[...] += jnp.sum(x * x, axis=0, keepdims=True)


def _bn_apply_kernel(x_ref, s_ref, q_ref, g_ref, b_ref, o_ref, *, inv_m, relu):
    x = x_ref[...]
    mean = s_ref[...] * inv_m
    var = q_ref[...] * inv_m - mean * mean
    y = (x - mean) * lax.rsqrt(var + 1e-5) * g_ref[...] + b_ref[...]
    if relu:
        y = jnp.maximum(y, 0.0)
    o_ref[...] = y


@functools.partial(jax.jit, static_argnames=("relu",))
def pallas_bn_apply(x, s, q, gamma, beta, relu=False):
    """Apply BN (given per-channel sum / sumsq) + optional fused ReLU."""
    B, H, W, C = x.shape
    M = B * H * W
    x2 = x.reshape(M, C)
    tm = _row_tile(M)
    out = pl.pallas_call(
        functools.partial(_bn_apply_kernel, inv_m=1.0 / M, relu=relu),
        out_shape=jax.ShapeDtypeStruct((M, C), jnp.float32),
        grid=(M // tm,),
        in_specs=[pl.BlockSpec((tm, C), lambda i: (i, 0)),
                  pl.BlockSpec((1, C), lambda i: (0, 0)),
                  pl.BlockSpec((1, C), lambda i: (0, 0)),
                  pl.BlockSpec((1, C), lambda i: (0, 0)),
                  pl.BlockSpec((1, C), lambda i: (0, 0))],
        out_specs=pl.BlockSpec((tm, C), lambda i: (i, 0)),
        compiler_params=pltpu.CompilerParams(
            dimension_semantics=("parallel",)),
    )(x2, s, q, gamma.reshape(1, C), beta.reshape(1, C))
    return out.reshape(B, H, W, C)


@functools.partial(jax.jit, static_argnames=("relu",))
def pallas_batchnorm(x, gamma, beta, relu=False):
    """Training-mode BatchNorm2d (biased variance, eps=1e-5) + optional ReLU."""
    B, H, W, C = x.shape
    M = B * H * W
    x2 = x.reshape(M, C)
    tm = _row_tile(M)
    s, q = pl.pallas_call(
        _bn_stats_kernel,
        out_shape=(jax.ShapeDtypeStruct((1, C), jnp.float32),
                   jax.ShapeDtypeStruct((1, C), jnp.float32)),
        grid=(M // tm,),
        in_specs=[pl.BlockSpec((tm, C), lambda i: (i, 0))],
        out_specs=(pl.BlockSpec((1, C), lambda i: (0, 0)),
                   pl.BlockSpec((1, C), lambda i: (0, 0))),
        compiler_params=pltpu.CompilerParams(
            dimension_semantics=("arbitrary",)),
    )(x2)
    return pallas_bn_apply(x, s, q, gamma, beta, relu=relu)


@functools.partial(jax.jit, static_argnames=("stride", "relu"))
def conv3x3_bn(x, w, gamma, beta, stride=1, relu=False):
    """conv3x3 -> BatchNorm [-> ReLU]; stats fused into the conv when s=1."""
    if stride == 1:
        out, s, q = pallas_conv3x3_s1_stats(x, w)
        return pallas_bn_apply(out, s, q, gamma, beta, relu=relu)
    out = conv2d(x, w, stride=stride, padding=1)
    return pallas_batchnorm(out, gamma, beta, relu=relu)


# ----------------------------------------------------------------------------
# MaxPool2d(3, stride=2, padding=1): separable dense max + strided decimation
# ----------------------------------------------------------------------------

def _maxpool_dense_kernel(xp_ref, o_ref, *, Hd, Wd):
    x = xp_ref[0]                                   # (Hp, Wp, C)
    m1 = x[:, 0:Wd, :]
    for kj in (1, 2):
        m1 = jnp.maximum(m1, x[:, kj:kj + Wd, :])
    m2 = m1[0:Hd, :, :]
    for ki in (1, 2):
        m2 = jnp.maximum(m2, m1[ki:ki + Hd, :, :])
    o_ref[0] = m2


@jax.jit
def pallas_maxpool_3x3_s2(x):
    B, H, W, C = x.shape
    xp = jnp.pad(x, ((0, 0), (1, 1), (1, 1), (0, 0)),
                 constant_values=-jnp.inf)
    dense = pl.pallas_call(
        functools.partial(_maxpool_dense_kernel, Hd=H, Wd=W),
        out_shape=jax.ShapeDtypeStruct((B, H, W, C), jnp.float32),
        grid=(B,),
        in_specs=[pl.BlockSpec((1, H + 2, W + 2, C), lambda b: (b, 0, 0, 0))],
        out_specs=pl.BlockSpec((1, H, W, C), lambda b: (b, 0, 0, 0)),
        compiler_params=pltpu.CompilerParams(
            dimension_semantics=("parallel",)),
    )(xp)
    return dense[:, ::2, ::2, :]


# ----------------------------------------------------------------------------
# Fused DisLayer tail: dw5x5+ReLU -> dw5x5 -> Gaussian mixing -> +identity,ReLU
# ----------------------------------------------------------------------------

def _dis_tail_kernel(xp_ref, idn_ref, w1_ref, b1_ref, w2_ref, b2_ref,
                     loc_ref, scal_ref, ps_ref, o_ref, v1p_ref, *, H, W, L):
    C = o_ref.shape[-1]
    x = xp_ref[0]                                   # (H+4, W+4, C) f32

    # depthwise 5x5 #1 (+ReLU): 5 hoisted sublane (kj) shifts, reused over ki
    acc1 = jnp.zeros((H, W, C), jnp.float32)
    for kj in range(5):
        xs = x[:, kj:kj + W, :]                     # (H+4, W, C)
        for ki in range(5):
            acc1 = acc1 + xs[ki:ki + H, :, :] * w1_ref[ki * 5 + kj, :]
    v1 = jnp.maximum(acc1 + b1_ref[...], 0.0)

    # re-pad v1 (padding=2) through a VMEM scratch for the second depthwise
    v1p_ref[...] = jnp.zeros_like(v1p_ref)
    v1p_ref[2:2 + H, 2:2 + W, :] = v1
    y = v1p_ref[...]
    acc2 = jnp.zeros((H, W, C), jnp.float32)
    for kj in range(5):
        ys = y[:, kj:kj + W, :]
        for ki in range(5):
            acc2 = acc2 + ys[ki:ki + H, :, :] * w2_ref[ki * 5 + kj, :]
    v2 = acc2 + b2_ref[...]

    # mean over locals of the diagonal-Gaussian pdf, using separability:
    # exp(-.5(z0^2+z1^2)) = exp(-.5 z0^2)[H,1] * exp(-.5 z1^2)[1,W]
    rows = lax.broadcasted_iota(jnp.float32, (H, 1), 0)
    cols = lax.broadcasted_iota(jnp.float32, (1, W), 1)
    s = ps_ref[0]
    pdf = jnp.zeros((H, W), jnp.float32)
    for l in range(L):
        mu0 = loc_ref[l, 0]
        mu1 = loc_ref[l, 1]
        s0 = scal_ref[l, 0]
        s1 = scal_ref[l, 1]
        zr = (rows * s - mu0) / s0
        zc = (cols * s - mu1) / s1
        er = jnp.exp(-0.5 * zr * zr)
        ec = jnp.exp(-0.5 * zc * zc) * (1.0 / (2.0 * math.pi * s0 * s1))
        pdf = pdf + er * ec
    mean_pdf = pdf * (1.0 / L)

    # fused residual epilogue: relu(x + value*mean_pdf + identity)
    xc = x[2:2 + H, 2:2 + W, :]
    o_ref[0] = jnp.maximum(xc + v2 * mean_pdf[:, :, None] + idn_ref[0], 0.0)


@jax.jit
def pallas_dis_residual(out, identity, dw1_w, dw1_b, dw2_w, dw2_b,
                        loc, scal, pscal):
    B, H, W, C = out.shape
    L = loc.shape[0]
    xp = jnp.pad(out, ((0, 0), (2, 2), (2, 2), (0, 0)))
    return pl.pallas_call(
        functools.partial(_dis_tail_kernel, H=H, W=W, L=L),
        out_shape=jax.ShapeDtypeStruct((B, H, W, C), jnp.float32),
        grid=(B,),
        in_specs=[
            pl.BlockSpec((1, H + 4, W + 4, C), lambda b: (b, 0, 0, 0)),
            pl.BlockSpec((1, H, W, C), lambda b: (b, 0, 0, 0)),
            pl.BlockSpec((25, C), lambda b: (0, 0)),
            pl.BlockSpec((1, C), lambda b: (0, 0)),
            pl.BlockSpec((25, C), lambda b: (0, 0)),
            pl.BlockSpec((1, C), lambda b: (0, 0)),
            pl.BlockSpec(memory_space=pltpu.MemorySpace.SMEM),
            pl.BlockSpec(memory_space=pltpu.MemorySpace.SMEM),
            pl.BlockSpec(memory_space=pltpu.MemorySpace.SMEM),
        ],
        out_specs=pl.BlockSpec((1, H, W, C), lambda b: (b, 0, 0, 0)),
        scratch_shapes=[pltpu.VMEM((H + 4, W + 4, C), jnp.float32)],
        compiler_params=pltpu.CompilerParams(
            dimension_semantics=("parallel",)),
    )(xp, identity, dw1_w, dw1_b.reshape(1, C), dw2_w, dw2_b.reshape(1, C),
      loc, scal, pscal)


# ----------------------------------------------------------------------------
# Global average pool (tiled over channels)
# ----------------------------------------------------------------------------

def _gap_kernel(x_ref, o_ref):
    o_ref[...] = jnp.mean(x_ref[...], axis=1)


@jax.jit
def pallas_global_avgpool(x):
    B, H, W, C = x.shape
    HW = H * W
    tc = 128 if C % 128 == 0 else C
    return pl.pallas_call(
        _gap_kernel,
        out_shape=jax.ShapeDtypeStruct((B, C), jnp.float32),
        grid=(C // tc,),
        in_specs=[pl.BlockSpec((B, HW, tc), lambda j: (0, 0, j))],
        out_specs=pl.BlockSpec((B, tc), lambda j: (0, j)),
        compiler_params=pltpu.CompilerParams(
            dimension_semantics=("parallel",)),
    )(x.reshape(B, HW, C))


# ----------------------------------------------------------------------------
# Model blocks
# ----------------------------------------------------------------------------

def basic_block(x, p, stride):
    out = conv3x3_bn(x, p["conv1_w"], p["bn1_g"], p["bn1_b"],
                     stride=stride, relu=True)
    out = conv3x3_bn(out, p["conv2_w"], p["bn2_g"], p["bn2_b"],
                     stride=1, relu=False)
    if "down_w" in p:
        identity = conv2d(x, p["down_w"], stride=stride, padding=0)
        identity = pallas_batchnorm(identity, p["down_g"], p["down_b"],
                                    relu=False)
    else:
        identity = x
    d = p["dis"]
    # DisLayer + residual add + ReLU fused in one per-batch kernel.
    # NOTE: self.embedding(x), the MultivariateNormal objects and the timing /
    # print loops in the PyTorch forward are dead code w.r.t. the output.
    return pallas_dis_residual(out, identity, d["dw1_w"], d["dw1_b"],
                               d["dw2_w"], d["dw2_b"],
                               d["loc"], d["scal"], d["pscal"])


def resnet_forward(params, x_nchw):
    x = jnp.transpose(x_nchw, (0, 2, 3, 1)).astype(jnp.float32)  # NCHW -> NHWC
    x = conv2d(x, params["conv1_w"], stride=2, padding=3)
    x = pallas_batchnorm(x, params["bn1_g"], params["bn1_b"], relu=True)
    x = pallas_maxpool_3x3_s2(x)
    for stage_stride, blocks in params["stages"]:
        for i, bp in enumerate(blocks):
            x = basic_block(x, bp, stride=stage_stride if i == 0 else 1)
    pooled = pallas_global_avgpool(x)                        # (B, 512)
    logits = pallas_matmul(pooled, params["fc_w"], params["fc_b"])
    return logits


# ----------------------------------------------------------------------------
# Deterministic parameter construction (synthetic; shapes follow the module)
# ----------------------------------------------------------------------------

def _kaiming_conv(key, cout, cin, kh, kw):
    fan_out = cout * kh * kw
    std = math.sqrt(2.0 / fan_out)
    return std * jax.random.normal(key, (cout, cin, kh, kw), jnp.float32)


def _make_dis_params(key, channel, local_num=8):
    k = jax.random.split(key, 4)
    std = math.sqrt(2.0 / 25.0)
    return dict(
        dw1_w=std * jax.random.normal(k[0], (25, channel), jnp.float32),
        dw1_b=jnp.zeros((channel,), jnp.float32),
        dw2_w=std * jax.random.normal(k[1], (25, channel), jnp.float32),
        dw2_b=jnp.zeros((channel,), jnp.float32),
        loc=jax.random.uniform(k[2], (local_num, 2), jnp.float32),
        scal=jax.random.uniform(k[3], (local_num, 2), jnp.float32,
                                minval=0.1, maxval=1.0),
        pscal=jnp.ones((1,), jnp.float32),
    )


def _make_basic_block_params(key, inplanes, planes, stride):
    k = jax.random.split(key, 4)
    p = dict(
        conv1_w=_kaiming_conv(k[0], planes, inplanes, 3, 3),
        bn1_g=jnp.ones((planes,), jnp.float32),
        bn1_b=jnp.zeros((planes,), jnp.float32),
        conv2_w=_kaiming_conv(k[1], planes, planes, 3, 3),
        bn2_g=jnp.ones((planes,), jnp.float32),
        bn2_b=jnp.zeros((planes,), jnp.float32),
        dis=_make_dis_params(k[2], planes),
    )
    if stride != 1 or inplanes != planes:
        p["down_w"] = _kaiming_conv(k[3], planes, inplanes, 1, 1)
        p["down_g"] = jnp.ones((planes,), jnp.float32)
        p["down_b"] = jnp.zeros((planes,), jnp.float32)
    return p


def make_resnet_params(key, layers=(1, 1, 1, 1), num_classes=10):
    keys = jax.random.split(key, 8)
    params = dict(
        conv1_w=_kaiming_conv(keys[0], 64, 3, 7, 7),
        bn1_g=jnp.ones((64,), jnp.float32),
        bn1_b=jnp.zeros((64,), jnp.float32),
    )
    stages = []
    inplanes = 64
    plan = [(64, layers[0], 1), (128, layers[1], 2),
            (256, layers[2], 2), (512, layers[3], 2)]
    for si, (planes, nblocks, stride) in enumerate(plan):
        bkeys = jax.random.split(keys[1 + si], nblocks)
        blocks = []
        for bi in range(nblocks):
            s = stride if bi == 0 else 1
            blocks.append(
                _make_basic_block_params(bkeys[bi], inplanes, planes, s))
            inplanes = planes
        stages.append((stride, blocks))
    params["stages"] = stages
    fk1, fk2 = jax.random.split(keys[5], 2)
    bound = 1.0 / math.sqrt(inplanes)
    params["fc_w"] = jax.random.uniform(fk1, (inplanes, num_classes),
                                        jnp.float32, -bound, bound)
    params["fc_b"] = jax.random.uniform(fk2, (num_classes,),
                                        jnp.float32, -bound, bound)
    return params


# ----------------------------------------------------------------------------

if __name__ == "__main__":
    key = jax.random.PRNGKey(0)
    pkey, xkey = jax.random.split(key)
    # ResNet(BasicBlock, [1, 1, 1, 1], num_classes=10); input NCHW like PyTorch.
    params = make_resnet_params(pkey, layers=(1, 1, 1, 1), num_classes=10)
    x = jax.random.normal(xkey, (2, 3, 32, 32), jnp.float32)
    logits = resnet_forward(params, x)
    jax.block_until_ready(logits)
    assert logits.shape == (2, 10)
    assert bool(jnp.all(jnp.isfinite(logits)))
    print("KERNEL_OK")
</pallas_src>

<mosaic_0001>
module attributes {stable_mosaic.version = 11 : i64} {
  func.func @_mm_kernel(%arg0: i32, %arg1: i32, %arg2: i32, %arg3: memref<256x256xbf16, #tpu.memory_space<vmem>>, %arg4: memref<256x128xbf16, #tpu.memory_space<vmem>>, %arg5: memref<256x128xf32, #tpu.memory_space<vmem>>, %arg6: memref<256x128xf32, #tpu.memory_space<vmem>>) attributes {dimension_semantics = [#tpu.dimension_semantics<parallel>, #tpu.dimension_semantics<parallel>, #tpu.dimension_semantics<arbitrary>], iteration_bounds = array<i64: 2, 1, 1>, scalar_prefetch = 0 : i64, scratch_operands = 1 : i64, tpu.core_type = #tpu.core_type<tc>, window_params = [{transform_indices = @transform_0, window_bounds = array<i64: 256, 256>}, {transform_indices = @transform_1, window_bounds = array<i64: 256, 128>}, {transform_indices = @transform_2, window_bounds = array<i64: 256, 128>}]} {
    %c0_i32 = arith.constant 0 : i32
    %0 = arith.cmpi eq, %arg2, %c0_i32 : i32
    %1 = arith.extui %0 : i1 to i32
    %c0_i32_0 = arith.constant 0 : i32
    %2 = arith.cmpi ne, %1, %c0_i32_0 : i32
    scf.if %2 {
      %cst_10 = arith.constant 0.000000e+00 : f32
      %12 = vector.broadcast %cst_10 : f32 to vector<256x128xf32>
      %c0_11 = arith.constant 0 : index
      %c0_12 = arith.constant 0 : index
      %13 = vector.load %arg6[%c0_11, %c0_12] : memref<256x128xf32, #tpu.memory_space<vmem>>, vector<256x128xf32>
      tpu.vector_store %arg6[%c0_11, %c0_12], %12 {strides = array<i32>} : memref<256x128xf32, #tpu.memory_space<vmem>>, vector<256x128xf32>,
    } else {
    }
    %c0 = arith.constant 0 : index
    %c0_1 = arith.constant 0 : index
    %3 = vector.load %arg6[%c0, %c0_1] : memref<256x128xf32, #tpu.memory_space<vmem>>, vector<256x128xf32>
    %c0_2 = arith.constant 0 : index
    %c0_3 = arith.constant 0 : index
    %4 = vector.load %arg3[%c0_2, %c0_3] : memref<256x256xbf16, #tpu.memory_space<vmem>>, vector<256x256xbf16>
    %c0_4 = arith.constant 0 : index
    %c0_5 = arith.constant 0 : index
    %5 = vector.load %arg4[%c0_4, %c0_5] : memref<256x128xbf16, #tpu.memory_space<vmem>>, vector<256x128xbf16>
    %cst = arith.constant dense<0.000000e+00> : vector<256x128xf32>
    %6 = tpu.matmul %4, %5, %cst {dimension_numbers = #tpu.dot_dimension_numbers<[1], [0], [0], [1], [0, 0, 1, 1], [], []>} : vector<256x256xbf16>, vector<256x128xbf16>, vector<256x128xf32> -> vector<256x128xf32>
    %7 = arith.addf %3, %6 : vector<256x128xf32>
    %c0_6 = arith.constant 0 : index
    %c0_7 = arith.constant 0 : index
    %8 = vector.load %arg6[%c0_6, %c0_7] : memref<256x128xf32, #tpu.memory_space<vmem>>, vector<256x128xf32>
    tpu.vector_store %arg6[%c0_6, %c0_7], %7 {strides = array<i32>} : memref<256x128xf32, #tpu.memory_space<vmem>>, vector<256x128xf32>,
    %c0_i32_8 = arith.constant 0 : i32
    %9 = arith.cmpi eq, %arg2, %c0_i32_8 : i32
    %10 = arith.extui %9 : i1 to i32
    %c0_i32_9 = arith.constant 0 : i32
    %11 = arith.cmpi ne, %10, %c0_i32_9 : i32
    scf.if %11 {
      %c0_10 = arith.constant 0 : index
      %c0_11 = arith.constant 0 : index
      %12 = vector.load %arg6[%c0_10, %c0_11] : memref<256x128xf32, #tpu.memory_space<vmem>>, vector<256x128xf32>
      %c0_12 = arith.constant 0 : index
      %c0_13 = arith.constant 0 : index
      %13 = vector.load %arg5[%c0_12, %c0_13] : memref<256x128xf32, #tpu.memory_space<vmem>>, vector<256x128xf32>
      tpu.vector_store %arg5[%c0_12, %c0_13], %12 {strides = array<i32>} : memref<256x128xf32, #tpu.memory_space<vmem>>, vector<256x128xf32>,
    } else {
    }
    return
  }
  func.func @transform_0(%arg0: i32, %arg1: i32, %arg2: i32) -> (i32, i32) {
    %c0_i32 = arith.constant 0 : i32
    return %arg0, %arg2 : i32, i32
  }
  func.func @transform_1(%arg0: i32, %arg1: i32, %arg2: i32) -> (i32, i32) {
    %c0_i32 = arith.constant 0 : i32
    return %arg2, %arg1 : i32, i32
  }
  func.func @transform_2(%arg0: i32, %arg1: i32, %arg2: i32) -> (i32, i32) {
    %c0_i32 = arith.constant 0 : i32
    return %arg0, %arg1 : i32, i32
  }
}

</mosaic_0001>

<llo_original>
// kernel: pallas_matmul.1
$region0: #{pallas_matmul.1}
  #allocation0 [shape = 'u32[]', space=smem, size = 0x4, offset = 0x4, fixed_abs, tag = 'smem constant byte address 0x4 - core index']
  #allocation1 [shape = 'u32[144,128]{1,0:T(1,128)}', space=vmem, size = 0x12000, scoped, tag = 'internal scratch']
  #allocation2 [shape = 'f32[256,128]{1,0:T(8,128)}', space=vmem, size = 0x20000, scoped, tag = 'scratch operand']
  %s0 = inlined_call_operand.vmem [shape: bf16[512,256], index: 0, kind: input, shape index: {}]
  %s1 = inlined_call_operand.vmem [shape: bf16[256,128], index: 1, kind: input, shape index: {}]
  %s2 = inlined_call_operand.vmem [shape: f32[512,128], index: 2, kind: output, shape index: {}]
  %s3 = sld [smem:[#allocation0]]
  $region49: #{pallas_matmul.1} parent=0
    _
  %s5 = ssub.s32 1, %s3
  %s6 = scalar_select 0, %s5, %s3
  loop: start=0, step=1, limit=4
  $region2: #{pallas_matmul.1} parent=0 // loop_pre_header
    _
  $region3: #{pallas_matmul.1} parent=0 // loop_header
    %s8 = sphi 0, %s12
    %p9 = scmp.ge.s32.totalorder %s8, 4
    %s15 = sphi 0, %s34
    %s16 = sphi 0, %s30
    %s17 = sphi 0, %s26
    %s18 = sphi 0, %s15
    %s19 = sphi 0, %s16
    %s20 = sphi 0, %s17
    %s21 = sphi 0, %s18
    %s22 = sphi 0, %s19
    %s23 = sphi 0, %s20
    %s39 = sphi 0, %s41
    %s42 = sphi 0, %s39
    %s43 = sphi 0, %s42
    %s59 = sphi 0, %s43
    %s67 = sphi 0, %s69
    %s70 = sphi 0, %s67
    %s71 = sphi 0, %s70
    %s87 = sphi 0, %s71
    %s95 = sphi 0, %s97
    %s98 = sphi 0, %s95
    %s99 = sphi 0, %s98
    %s115 = sphi 0, %s99
  $region4: #{pallas_matmul.1} parent=0 // loop_header_branch
    %11 = sbr.rel (%p9) target = $region8
  $region5: #{pallas_matmul.1} parent=0 // loop_body
    %s13 = ssub.s32 %s8, 1
    %s14 = ssub.s32 %s8, 2
    %s24 = sadd.s32 1, %s17
    %p25 = scmp.ge.s32.totalorder %s24, 1
    %s26 = scalar_select %p25, 0, %s24
    %s27 = sadd.s32 1, %s16
    %s28 = scalar_select %p25, %s27, %s16
    %p29 = scmp.ge.s32.totalorder %s28, 1
    %s30 = scalar_select %p29, 0, %s28
    %s31 = sadd.s32 1, %s15
    %s32 = scalar_select %p29, %s31, %s15
    %p33 = scmp.ge.s32.totalorder %s32, 2
    %s34 = scalar_select %p33, 0, %s32
    %s35 = ssub.s32 %s15, %s34
    %s36 = ssub.s32 %s17, %s26
    %s37 = sor.u32 %s35, %s36
    %p38 = scmp.eq.s32.totalorder %s37, 0
    %s40 = sadd.s32 %s39, 1
    %s41 = scalar_select %p38, %s39, %s40
    %p44 = pneg %p38
    %p45 = scmp.eq.s32.totalorder %s8, 1
    %p46 = por %p44, %p45
    %p47 = scmp.ne.s32.totalorder %s39, %s42
    %p48 = scmp.eq.s32.totalorder %s8, 0
    %p49 = por %p47, %p48
    %p50 = scmp.ne.s32.totalorder %s39, %s42
    %p51 = scmp.eq.s32.totalorder %s13, 1
    %p52 = por %p50, %p51
    %p53 = scmp.ne.s32.totalorder %s42, %s43
    %p54 = scmp.eq.s32.totalorder %s13, 0
    %p55 = por %p53, %p54
    %p56 = scmp.ne.s32.totalorder %s42, %s43
    %p57 = scmp.eq.s32.totalorder %s14, 1
    %p58 = por %p56, %p57
    %p60 = scmp.ne.s32.totalorder %s43, %s59
    %p61 = scmp.eq.s32.totalorder %s14, 0
    %p62 = por %p60, %p61
    %s63 = ssub.s32 %s17, %s26
    %s64 = ssub.s32 %s16, %s30
    %s65 = sor.u32 %s63, %s64
    %p66 = scmp.eq.s32.totalorder %s65, 0
    %s68 = sadd.s32 %s67, 1
    %s69 = scalar_select %p66, %s67, %s68
    %p72 = pneg %p66
    %p73 = scmp.eq.s32.totalorder %s8, 1
    %p74 = por %p72, %p73
    %p75 = scmp.ne.s32.totalorder %s67, %s70
    %p76 = scmp.eq.s32.totalorder %s8, 0
    %p77 = por %p75, %p76
    %p78 = scmp.ne.s32.totalorder %s67, %s70
    %p79 = scmp.eq.s32.totalorder %s13, 1
    %p80 = por %p78, %p79
    %p81 = scmp.ne.s32.totalorder %s70, %s71
    %p82 = scmp.eq.s32.totalorder %s13, 0
    %p83 = por %p81, %p82
    %p84 = scmp.ne.s32.totalorder %s70, %s71
    %p85 = scmp.eq.s32.totalorder %s14, 1
    %p86 = por %p84, %p85
    %p88 = scmp.ne.s32.totalorder %s71, %s87
    %p89 = scmp.eq.s32.totalorder %s14, 0
    %p90 = por %p88, %p89
    %s91 = ssub.s32 %s15, %s34
    %s92 = ssub.s32 %s16, %s30
    %s93 = sor.u32 %s91, %s92
    %p94 = scmp.eq.s32.totalorder %s93, 0
    %s96 = sadd.s32 %s95, 1
    %s97 = scalar_select %p94, %s95, %s96
    %p100 = pneg %p94
    %p101 = scmp.eq.s32.totalorder %s8, 1
    %p102 = por %p100, %p101
    %p103 = scmp.ne.s32.totalorder %s95, %s98
    %p104 = scmp.eq.s32.totalorder %s8, 0
    %p105 = por %p103, %p104
    %p106 = scmp.ne.s32.totalorder %s95, %s98
    %p107 = scmp.eq.s32.totalorder %s13, 1
    %p108 = por %p106, %p107
    %p109 = scmp.ne.s32.totalorder %s98, %s99
    %p110 = scmp.eq.s32.totalorder %s13, 0
    %p111 = por %p109, %p110
    %p112 = scmp.ne.s32.totalorder %s98, %s99
    %p113 = scmp.eq.s32.totalorder %s14, 1
    %p114 = por %p112, %p113
    %p116 = scmp.ne.s32.totalorder %s99, %s115
    %p117 = scmp.eq.s32.totalorder %s14, 0
    %p118 = por %p116, %p117
    %p119 = scmp.le.s32.totalorder 1, %s8
    %p120 = scmp.lt.s32.totalorder %s8, 3
    %p121 = pnand %p119, %p120
    %p122 = pneg %p121
    // Predicated region
    $region9: #{pallas_matmul.1} parent=5 // pred_check
      _
    $region10: #{pallas_matmul.1} parent=5 // pred_check_branch
      %124 = sbr.rel (%p121) target = $region12
    $region11: #{pallas_matmul.1} parent=5 // pred_region
      %s125 = ssub.s32 %s8, 1
      // Predicated region
      $region13: #{pallas_matmul.1} parent=11 // pred_check
        %p126 = pneg %p83
      $region14: #{pallas_matmul.1} parent=11 // pred_check_branch
        %128 = sbr.rel (%p126) target = $region16
      $region15: #{pallas_matmul.1} parent=11 // pred_region
        %s129 = smul.u32 32, %s20
        %p130 = scmp.lt.s32.totalorder %s129, 31
        %s131 = scalar_select %p130, %s129, 31
        %p132 = scmp.lt.s32.totalorder %s19, 0
        %s133 = scalar_select %p132, %s19, 0
        %s134 = sadd.s32 %s133, %s131
        %s135 = smul.addr %s134, 4
        %s136 = scalar_lea.vmem %s1, %s135
        %s137 = smul.u32 32, %s20
      $region16: #{pallas_matmul.1} parent=11 // pred_fallthru
        _
    $region12: #{pallas_matmul.1} parent=5 // pred_fallthru
      _
    %p138 = scmp.lt.s32.totalorder %s8, 2
    // Predicated region
    $region17: #{pallas_matmul.1} parent=5 // pred_check
      %p139 = pneg %p138
    $region18: #{pallas_matmul.1} parent=5 // pred_check_branch
      %141 = sbr.rel (%p139) target = $region20
    $region19: #{pallas_matmul.1} parent=5 // pred_region
      // Predicated region
      $region21: #{pallas_matmul.1} parent=19 // pred_check
        %p142 = pneg %p49
      $region22: #{pallas_matmul.1} parent=19 // pred_check_branch
        %144 = sbr.rel (%p142) target = $region24
      $region23: #{pallas_matmul.1} parent=19 // pred_region
        %s145 = smul.u32 32, %s15
        %s146 = smul.u32 2, %s17
        %p147 = scmp.lt.s32.totalorder %s145, 63
        %s148 = scalar_select %p147, %s145, 63
        %p149 = scmp.lt.s32.totalorder %s146, 1
        %s150 = scalar_select %p149, %s146, 1
        %s151 = smul.addr %s148, 2
        %s152 = sadd.s32 %s150, %s151
        %s153 = smul.addr %s152, 4
        %s154 = scalar_lea.vmem %s0, %s153
        %s155 = smul.u32 32, %s15
        %s156 = smul.u32 2, %s17
      $region24: #{pallas_matmul.1} parent=19 // pred_fallthru
        _
    $region20: #{pallas_matmul.1} parent=5 // pred_fallthru
      _
    %p157 = scmp.le.s32.totalorder 1, %s8
    %p158 = scmp.lt.s32.totalorder %s8, 3
    %p159 = pnand %p157, %p158
    %p160 = pneg %p159
    // Predicated region
    $region25: #{pallas_matmul.1} parent=5 // pred_check
      _
    $region26: #{pallas_matmul.1} parent=5 // pred_check_branch
      %162 = sbr.rel (%p159) target = $region28
    $region27: #{pallas_matmul.1} parent=5 // pred_region
      %s163 = ssub.s32 %s8, 1
      %s164 = smul.u32 32, %s18
      %s165 = smul.u32 2, %s20
      %p166 = scmp.lt.s32.totalorder %s164, 63
      %s167 = scalar_select %p166, %s164, 63
      %p168 = scmp.lt.s32.totalorder %s165, 1
      %s169 = scalar_select %p168, %s165, 1
      %s170 = smul.addr %s167, 2
      %s171 = sadd.s32 %s169, %s170
      %s172 = smul.addr %s171, 4
      %s173 = scalar_lea.vmem %s0, %s172
      %p174 = pneg %p55
      %p175 = pneg %p52
      %s176 = smul.u32 32, %s20
      %p177 = scmp.lt.s32.totalorder %s176, 31
      %s178 = scalar_select %p177, %s176, 31
      %p179 = scmp.lt.s32.totalorder %s19, 0
      %s180 = scalar_select %p179, %s19, 0
      %s181 = sadd.s32 %s180, %s178
      %s182 = smul.addr %s181, 4
      %s183 = scalar_lea.vmem %s1, %s182
      %p184 = pneg %p83
      %p185 = pneg %p80
      %p186 = pneg %p111
      %p187 = pneg %p108
      %s188 = smul.u32 32, %s18
      %p189 = scmp.lt.s32.totalorder %s188, 63
      %s190 = scalar_select %p189, %s188, 63
      %p191 = scmp.lt.s32.totalorder %s19, 0
      %s192 = scalar_select %p191, %s19, 0
      %s193 = sadd.s32 %s192, %s190
      %s194 = smul.addr %s193, 8
      %s195 = scalar_lea.vmem %s2, %s194
      %s196 = smul.u32 32, %s18
      %s197 = smul.u32 2, %s20
      %p198 = scmp.lt.s32.totalorder %s196, 63
      %s199 = scalar_select %p198, %s196, 63
      %p200 = scmp.lt.s32.totalorder %s197, 1
      %s201 = scalar_select %p200, %s197, 1
      %s202 = smul.addr %s199, 2
      %s203 = sadd.s32 %s201, %s202
      %s204 = smul.addr %s203, 4
      %s205 = scalar_lea.vmem %s0, %s204
      %s206 = smul.u32 32, %s18
      %s207 = smul.u32 2, %s20
      %s208 = smul.u32 32, %s20
      %p209 = scmp.lt.s32.totalorder %s208, 31
      %s210 = scalar_select %p209, %s208, 31
      %p211 = scmp.lt.s32.totalorder %s19, 0
      %s212 = scalar_select %p211, %s19, 0
      %s213 = sadd.s32 %s212, %s210
      %s214 = smul.addr %s213, 4
      %s215 = scalar_lea.vmem %s1, %s214
      %s216 = smul.u32 32, %s20
      %s217 = smul.u32 32, %s18
      %p218 = scmp.lt.s32.totalorder %s217, 63
      %s219 = scalar_select %p218, %s217, 63
      %p220 = scmp.lt.s32.totalorder %s19, 0
      %s221 = scalar_select %p220, %s19, 0
      %s222 = sadd.s32 %s221, %s219
      %s223 = smul.addr %s222, 8
      %s224 = scalar_lea.vmem %s2, %s223
      %s225 = smul.u32 32, %s18
      %p227 = scmp.eq.s32.totalorder %s20, 0
      // Predicated region
      $region29: #{pallas_matmul.1} parent=27 // pred_check
        %p228 = pneg %p227
      $region30: #{pallas_matmul.1} parent=27 // pred_check_branch
        %230 = sbr.rel (%p228) target = $region32
      $region31: #{pallas_matmul.1} parent=27 // pred_region
        %231 = vst [vmem:[#allocation2] sm:$0xff] 0.0
        %232 = vst [vmem:[#allocation2 + $0x8] sm:$0xff] 0.0
        %233 = vst [vmem:[#allocation2 + $0x10] sm:$0xff] 0.0
        %234 = vst [vmem:[#allocation2 + $0x18] sm:$0xff] 0.0
        %235 = vst [vmem:[#allocation2 + $0x20] sm:$0xff] 0.0
        %236 = vst [vmem:[#allocation2 + $0x28] sm:$0xff] 0.0
        %237 = vst [vmem:[#allocation2 + $0x30] sm:$0xff] 0.0
        %238 = vst [vmem:[#allocation2 + $0x38] sm:$0xff] 0.0
        %239 = vst [vmem:[#allocation2 + $0x40] sm:$0xff] 0.0
        %240 = vst [vmem:[#allocation2 + $0x48] sm:$0xff] 0.0
        %241 = vst [vmem:[#allocation2 + $0x50] sm:$0xff] 0.0
        %242 = vst [vmem:[#allocation2 + $0x58] sm:$0xff] 0.0
        %243 = vst [vmem:[#allocation2 + $0x60] sm:$0xff] 0.0
        %244 = vst [vmem:[#allocation2 + $0x68] sm:$0xff] 0.0
        %245 = vst [vmem:[#allocation2 + $0x70] sm:$0xff] 0.0
        %246 = vst [vmem:[#allocation2 + $0x78] sm:$0xff] 0.0
        %247 = vst [vmem:[#allocation2 + $0x80] sm:$0xff] 0.0
        %248 = vst [vmem:[#allocation2 + $0x88] sm:$0xff] 0.0
        %249 = vst [vmem:[#allocation2 + $0x90] sm:$0xff] 0.0
        %250 = vst [vmem:[#allocation2 + $0x98] sm:$0xff] 0.0
        %251 = vst [vmem:[#allocation2 + $0xa0] sm:$0xff] 0.0
        %252 = vst [vmem:[#allocation2 + $0xa8] sm:$0xff] 0.0
        %253 = vst [vmem:[#allocation2 + $0xb0] sm:$0xff] 0.0
        %254 = vst [vmem:[#allocation2 + $0xb8] sm:$0xff] 0.0
        %255 = vst [vmem:[#allocation2 + $0xc0] sm:$0xff] 0.0
        %256 = vst [vmem:[#allocation2 + $0xc8] sm:$0xff] 0.0
        %257 = vst [vmem:[#allocation2 + $0xd0] sm:$0xff] 0.0
        %258 = vst [vmem:[#allocation2 + $0xd8] sm:$0xff] 0.0
        %259 = vst [vmem:[#allocation2 + $0xe0] sm:$0xff] 0.0
        %260 = vst [vmem:[#allocation2 + $0xe8] sm:$0xff] 0.0
        %261 = vst [vmem:[#allocation2 + $0xf0] sm:$0xff] 0.0
        %262 = vst [vmem:[#allocation2 + $0xf8] sm:$0xff] 0.0
      $region32: #{pallas_matmul.1} parent=27 // pred_fallthru
        _
      %v263 = vld [vmem:[#allocation2] sm:$0xff]
      %v264 = vld [vmem:[#allocation2 + $0x8] sm:$0xff]
      %v265 = vld [vmem:[#allocation2 + $0x10] sm:$0xff]
      %v266 = vld [vmem:[#allocation2 + $0x18] sm:$0xff]
      %v267 = vld [vmem:[#allocation2 + $0x20] sm:$0xff]
      %v268 = vld [vmem:[#allocation2 + $0x28] sm:$0xff]
      %v269 = vld [vmem:[#allocation2 + $0x30] sm:$0xff]
      %v270 = vld [vmem:[#allocation2 + $0x38] sm:$0xff]
      %v271 = vld [vmem:[#allocation2 + $0x40] sm:$0xff]
      %v272 = vld [vmem:[#allocation2 + $0x48] sm:$0xff]
      %v273 = vld [vmem:[#allocation2 + $0x50] sm:$0xff]
      %v274 = vld [vmem:[#allocation2 + $0x58] sm:$0xff]
      %v275 = vld [vmem:[#allocation2 + $0x60] sm:$0xff]
      %v276 = vld [vmem:[#allocation2 + $0x68] sm:$0xff]
      %v277 = vld [vmem:[#allocation2 + $0x70] sm:$0xff]
      %v278 = vld [vmem:[#allocation2 + $0x78] sm:$0xff]
      %v279 = vld [vmem:[#allocation2 + $0x80] sm:$0xff]
      %v280 = vld [vmem:[#allocation2 + $0x88] sm:$0xff]
      %v281 = vld [vmem:[#allocation2 + $0x90] sm:$0xff]
      %v282 = vld [vmem:[#allocation2 + $0x98] sm:$0xff]
      %v283 = vld [vmem:[#allocation2 + $0xa0] sm:$0xff]
      %v284 = vld [vmem:[#allocation2 + $0xa8] sm:$0xff]
      %v285 = vld [vmem:[#allocation2 + $0xb0] sm:$0xff]
      %v286 = vld [vmem:[#allocation2 + $0xb8] sm:$0xff]
      %v287 = vld [vmem:[#allocation2 + $0xc0] sm:$0xff]
      %v288 = vld [vmem:[#allocation2 + $0xc8] sm:$0xff]
      %v289 = vld [vmem:[#allocation2 + $0xd0] sm:$0xff]
      %v290 = vld [vmem:[#allocation2 + $0xd8] sm:$0xff]
      %v291 = vld [vmem:[#allocation2 + $0xe0] sm:$0xff]
      %v292 = vld [vmem:[#allocation2 + $0xe8] sm:$0xff]
      %v293 = vld [vmem:[#allocation2 + $0xf0] sm:$0xff]
      %v294 = vld [vmem:[#allocation2 + $0xf8] sm:$0xff]
      %v295 = vld [vmem:[%s205] sm:$0xff]
      %v296 = vld [vmem:[%s205 + $0x8] sm:$0xff]
      %v297 = vld [vmem:[%s205 + $0x10] sm:$0xff]
      %v298 = vld [vmem:[%s205 + $0x18] sm:$0xff]
      %v299 = vld [vmem:[%s205 + $0x20] sm:$0xff]
      %v300 = vld [vmem:[%s205 + $0x28] sm:$0xff]
      %v301 = vld [vmem:[%s205 + $0x30] sm:$0xff]
      %v302 = vld [vmem:[%s205 + $0x38] sm:$0xff]
      %v303 = vld [vmem:[%s205 + $0x40] sm:$0xff]
      %v304 = vld [vmem:[%s205 + $0x48] sm:$0xff]
      %v305 = vld [vmem:[%s205 + $0x50] sm:$0xff]
      %v306 = vld [vmem:[%s205 + $0x58] sm:$0xff]
      %v307 = vld [vmem:[%s205 + $0x60] sm:$0xff]
      %v308 = vld [vmem:[%s205 + $0x68] sm:$0xff]
      %v309 = vld [vmem:[%s205 + $0x70] sm:$0xff]
      %v310 = vld [vmem:[%s205 + $0x78] sm:$0xff]
      %v311 = vld [vmem:[%s205 + $0x80] sm:$0xff]
      %v312 = vld [vmem:[%s205 + $0x88] sm:$0xff]
      %v313 = vld [vmem:[%s205 + $0x90] sm:$0xff]
      %v314 = vld [vmem:[%s205 + $0x98] sm:$0xff]
      %v315 = vld [vmem:[%s205 + $0xa0] sm:$0xff]
      %v316 = vld [vmem:[%s205 + $0xa8] sm:$0xff]
      %v317 = vld [vmem:[%s205 + $0xb0] sm:$0xff]
      %v318 = vld [vmem:[%s205 + $0xb8] sm:$0xff]
      %v319 = vld [vmem:[%s205 + $0xc0] sm:$0xff]
      %v320 = vld [vmem:[%s205 + $0xc8] sm:$0xff]
      %v321 = vld [vmem:[%s205 + $0xd0] sm:$0xff]
      %v322 = vld [vmem:[%s205 + $0xd8] sm:$0xff]
      %v323 = vld [vmem:[%s205 + $0xe0] sm:$0xff]
      %v324 = vld [vmem:[%s205 + $0xe8] sm:$0xff]
      %v325 = vld [vmem:[%s205 + $0xf0] sm:$0xff]
      %v326 = vld [vmem:[%s205 + $0xf8] sm:$0xff]
      %v327 = vld [vmem:[%s215] sm:$0xf]
      %v328 = vld [vmem:[%s215 + $0x4] sm:$0xf]
      %v329 = vld [vmem:[%s215 + $0x8] sm:$0xf]
      %v330 = vld [vmem:[%s215 + $0xc] sm:$0xf]
      %v331 = vld [vmem:[%s215 + $0x10] sm:$0xf]
      %v332 = vld [vmem:[%s215 + $0x14] sm:$0xf]
      %v333 = vld [vmem:[%s215 + $0x18] sm:$0xf]
      %v334 = vld [vmem:[%s215 + $0x1c] sm:$0xf]
      %v335 = vld [vmem:[%s215 + $0x20] sm:$0xf]
      %v336 = vld [vmem:[%s215 + $0x24] sm:$0xf]
      %v337 = vld [vmem:[%s215 + $0x28] sm:$0xf]
      %v338 = vld [vmem:[%s215 + $0x2c] sm:$0xf]
      %v339 = vld [vmem:[%s215 + $0x30] sm:$0xf]
      %v340 = vld [vmem:[%s215 + $0x34] sm:$0xf]
      %v341 = vld [vmem:[%s215 + $0x38] sm:$0xf]
      %v342 = vld [vmem:[%s215 + $0x3c] sm:$0xf]
      %v343 = vld [vmem:[%s215 + $0x40] sm:$0xf]
      %v344 = vld [vmem:[%s215 + $0x44] sm:$0xf]
      %v345 = vld [vmem:[%s215 + $0x48] sm:$0xf]
      %v346 = vld [vmem:[%s215 + $0x4c] sm:$0xf]
      %v347 = vld [vmem:[%s215 + $0x50] sm:$0xf]
      %v348 = vld [vmem:[%s215 + $0x54] sm:$0xf]
      %v349 = vld [vmem:[%s215 + $0x58] sm:$0xf]
      %v350 = vld [vmem:[%s215 + $0x5c] sm:$0xf]
      %v351 = vld [vmem:[%s215 + $0x60] sm:$0xf]
      %v352 = vld [vmem:[%s215 + $0x64] sm:$0xf]
      %v353 = vld [vmem:[%s215 + $0x68] sm:$0xf]
      %v354 = vld [vmem:[%s215 + $0x6c] sm:$0xf]
      %v355 = vld [vmem:[%s215 + $0x70] sm:$0xf]
      %v356 = vld [vmem:[%s215 + $0x74] sm:$0xf]
      %v357 = vld [vmem:[%s215 + $0x78] sm:$0xf]
      %v358 = vld [vmem:[%s215 + $0x7c] sm:$0xf]
      %v391 = vunpack.c.l.b16 %v295
      %v392 = vunpack.c.h.b16 %v295
      %v393 = vunpack.c.l.b16 %v296
      %v394 = vunpack.c.h.b16 %v296
      %v395 = vunpack.c.l.b16 %v297
      %v396 = vunpack.c.h.b16 %v297
      %v397 = vunpack.c.l.b16 %v298
      %v398 = vunpack.c.h.b16 %v298
      %v399 = vunpack.c.l.b16 %v299
      %v400 = vunpack.c.h.b16 %v299
      %v401 = vunpack.c.l.b16 %v300
      %v402 = vunpack.c.h.b16 %v300
      %v403 = vunpack.c.l.b16 %v301
      %v404 = vunpack.c.h.b16 %v301
      %v405 = vunpack.c.l.b16 %v302
      %v406 = vunpack.c.h.b16 %v302
      %v407 = vunpack.c.l.b16 %v303
      %v408 = vunpack.c.h.b16 %v303
      %v409 = vunpack.c.l.b16 %v304
      %v410 = vunpack.c.h.b16 %v304
      %v411 = vunpack.c.l.b16 %v305
      %v412 = vunpack.c.h.b16 %v305
      %v413 = vunpack.c.l.b16 %v306
      %v414 = vunpack.c.h.b16 %v306
      %v415 = vunpack.c.l.b16 %v307
      %v416 = vunpack.c.h.b16 %v307
      %v417 = vunpack.c.l.b16 %v308
      %v418 = vunpack.c.h.b16 %v308
      %v419 = vunpack.c.l.b16 %v309
      %v420 = vunpack.c.h.b16 %v309
      %v421 = vunpack.c.l.b16 %v310
      %v422 = vunpack.c.h.b16 %v310
      %v423 = vunpack.c.l.b16 %v311
      %v424 = vunpack.c.h.b16 %v311
      %v425 = vunpack.c.l.b16 %v312
      %v426 = vunpack.c.h.b16 %v312
      %v427 = vunpack.c.l.b16 %v313
      %v428 = vunpack.c.h.b16 %v313
      %v429 = vunpack.c.l.b16 %v314
      %v430 = vunpack.c.h.b16 %v314
      %v431 = vunpack.c.l.b16 %v315
      %v432 = vunpack.c.h.b16 %v315
      %v433 = vunpack.c.l.b16 %v316
      %v434 = vunpack.c.h.b16 %v316
      %v435 = vunpack.c.l.b16 %v317
      %v436 = vunpack.c.h.b16 %v317
      %v437 = vunpack.c.l.b16 %v318
      %v438 = vunpack.c.h.b16 %v318
      %v439 = vunpack.c.l.b16 %v319
      %v440 = vunpack.c.h.b16 %v319
      %v441 = vunpack.c.l.b16 %v320
      %v442 = vunpack.c.h.b16 %v320
      %v443 = vunpack.c.l.b16 %v321
      %v444 = vunpack.c.h.b16 %v321
      %v445 = vunpack.c.l.b16 %v322
      %v446 = vunpack.c.h.b16 %v322
      %v447 = vunpack.c.l.b16 %v323
      %v448 = vunpack.c.h.b16 %v323
      %v449 = vunpack.c.l.b16 %v324
      %v450 = vunpack.c.h.b16 %v324
      %v451 = vunpack.c.l.b16 %v325
      %v452 = vunpack.c.h.b16 %v325
      %v453 = vunpack.c.l.b16 %v326
      %v454 = vunpack.c.h.b16 %v326
      %v455 = vpack.c.b16 %v393, %v391
      %v456 = vpack.c.b16 %v394, %v392
      %v457 = vpack.c.b16 %v397, %v395
      %v458 = vpack.c.b16 %v398, %v396
      %v459 = vpack.c.b16 %v401, %v399
      %v460 = vpack.c.b16 %v402, %v400
      %v461 = vpack.c.b16 %v405, %v403
      %v462 = vpack.c.b16 %v406, %v404
      %v463 = vpack.c.b16 %v409, %v407
      %v464 = vpack.c.b16 %v410, %v408
      %v465 = vpack.c.b16 %v413, %v411
      %v466 = vpack.c.b16 %v414, %v412
      %v467 = vpack.c.b16 %v417, %v415
      %v468 = vpack.c.b16 %v418, %v416
      %v469 = vpack.c.b16 %v421, %v419
      %v470 = vpack.c.b16 %v422, %v420
      %v471 = vpack.c.b16 %v425, %v423
      %v472 = vpack.c.b16 %v426, %v424
      %v473 = vpack.c.b16 %v429, %v427
      %v474 = vpack.c.b16 %v430, %v428
      %v475 = vpack.c.b16 %v433, %v431
      %v476 = vpack.c.b16 %v434, %v432
      %v477 = vpack.c.b16 %v437, %v435
      %v478 = vpack.c.b16 %v438, %v436
      %v479 = vpack.c.b16 %v441, %v439
      %v480 = vpack.c.b16 %v442, %v440
      %v481 = vpack.c.b16 %v445, %v443
      %v482 = vpack.c.b16 %v446, %v444
      %v483 = vpack.c.b16 %v449, %v447
      %v484 = vpack.c.b16 %v450, %v448
      %v485 = vpack.c.b16 %v453, %v451
      %v486 = vpack.c.b16 %v454, %v452
      %v551 = vunpack.c.l.b16 %v327
      %v552 = vunpack.c.l.b16 %v328
      %v553 = vunpack.c.l.b16 %v329
      %v554 = vunpack.c.l.b16 %v330
      %v555 = vunpack.c.l.b16 %v331
      %v556 = vunpack.c.l.b16 %v332
      %v557 = vunpack.c.l.b16 %v333
      %v558 = vunpack.c.l.b16 %v334
      %v559 = vunpack.c.l.b16 %v335
      %v560 = vunpack.c.l.b16 %v336
      %v561 = vunpack.c.l.b16 %v337
      %v562 = vunpack.c.l.b16 %v338
      %v563 = vunpack.c.l.b16 %v339
      %v564 = vunpack.c.l.b16 %v340
      %v565 = vunpack.c.l.b16 %v341
      %v566 = vunpack.c.l.b16 %v342
      %v567 = vunpack.c.l.b16 %v343
      %v568 = vunpack.c.l.b16 %v344
      %v569 = vunpack.c.l.b16 %v345
      %v570 = vunpack.c.l.b16 %v346
      %v571 = vunpack.c.l.b16 %v347
      %v572 = vunpack.c.l.b16 %v348
      %v573 = vunpack.c.l.b16 %v349
      %v574 = vunpack.c.l.b16 %v350
      %v575 = vunpack.c.l.b16 %v351
      %v576 = vunpack.c.l.b16 %v352
      %v577 = vunpack.c.l.b16 %v353
      %v578 = vunpack.c.l.b16 %v354
      %v579 = vunpack.c.l.b16 %v355
      %v580 = vunpack.c.l.b16 %v356
      %v581 = vunpack.c.l.b16 %v357
      %v582 = vunpack.c.l.b16 %v358
      %v583 = vpack.c.b16 %v552, %v551
      %v584 = vpack.c.b16 %v554, %v553
      %v585 = vpack.c.b16 %v556, %v555
      %v586 = vpack.c.b16 %v558, %v557
      %v587 = vpack.c.b16 %v560, %v559
      %v588 = vpack.c.b16 %v562, %v561
      %v589 = vpack.c.b16 %v564, %v563
      %v590 = vpack.c.b16 %v566, %v565
      %v591 = vpack.c.b16 %v568, %v567
      %v592 = vpack.c.b16 %v570, %v569
      %v593 = vpack.c.b16 %v572, %v571
      %v594 = vpack.c.b16 %v574, %v573
      %v595 = vpack.c.b16 %v576, %v575
      %v596 = vpack.c.b16 %v578, %v577
      %v597 = vpack.c.b16 %v580, %v579
      %v598 = vpack.c.b16 %v582, %v581
      %615 = vmatprep.subr.bf16.mxu0 0
      %616 = vmatpush1.bf16.msra.mxu0 %v590
      %617 = vmatprep.subr.bf16.mxu0 0
      %618 = vmatpush1.bf16.msra.mxu0 %v589
      %619 = vmatprep.subr.bf16.mxu0 0
      %620 = vmatpush1.bf16.msra.mxu0 %v588
      %621 = vmatprep.subr.bf16.mxu0 0
      %622 = vmatpush1.bf16.msra.mxu0 %v587
      %623 = vmatprep.subr.bf16.mxu0 0
      %624 = vmatpush1.bf16.msra.mxu0 %v586
      %625 = vmatprep.subr.bf16.mxu0 0
      %626 = vmatpush1.bf16.msra.mxu0 %v585
      %627 = vmatprep.subr.bf16.mxu0 0
      %628 = vmatpush1.bf16.msra.mxu0 %v584
      %629 = vmatprep.subr.bf16.mxu0 0
      %630 = vmatpush1.bf16.msra.mxu0 %v583
      %631 = vmatprep.subr.bf16.mxu0 0
      %632 = vmatpush2.bf16.msra.mxu0 %v598
      %633 = vmatprep.subr.bf16.mxu0 0
      %634 = vmatpush2.bf16.msra.mxu0 %v597
      %635 = vmatprep.subr.bf16.mxu0 0
      %636 = vmatpush2.bf16.msra.mxu0 %v596
      %637 = vmatprep.subr.bf16.mxu0 0
      %638 = vmatpush2.bf16.msra.mxu0 %v595
      %639 = vmatprep.subr.bf16.mxu0 0
      %640 = vmatpush2.bf16.msra.mxu0 %v594
      %641 = vmatprep.subr.bf16.mxu0 0
      %642 = vmatpush2.bf16.msra.mxu0 %v593
      %643 = vmatprep.subr.bf16.mxu0 0
      %644 = vmatpush2.bf16.msra.mxu0 %v592
      %645 = vmatprep.subr.bf16.mxu0 0
      %646 = vmatpush2.bf16.msra.mxu0 %v591
      %647 = vmatprep.mubr.bf16.mxu0 %v456
      %648 = vmatmul.mubr.bf16.gmra.mxu0 %v455
      %v649 = vpop.f32.mrf.mxu0
      %v650 = vadd.f32 0.0, %v649
      %v651 = vpop.f32.mrf.mxu0
      %v652 = vpop.f32.mrf.mxu0
      %v653 = vadd.f32 0.0, %v652
      %v654 = vpop.f32.mrf.mxu0
      %655 = vmatprep.mubr.bf16.mxu0 %v458
      %656 = vmatmul.mubr.bf16.gmra.mxu0 %v457
      %v657 = vpop.f32.mrf.mxu0
      %v658 = vadd.f32 0.0, %v657
      %v659 = vpop.f32.mrf.mxu0
      %v660 = vpop.f32.mrf.mxu0
      %v661 = vadd.f32 0.0, %v660
      %v662 = vpop.f32.mrf.mxu0
      %663 = vmatprep.mubr.bf16.mxu0 %v460
      %664 = vmatmul.mubr.bf16.gmra.mxu0 %v459
      %v665 = vpop.f32.mrf.mxu0
      %v666 = vadd.f32 0.0, %v665
      %v667 = vpop.f32.mrf.mxu0
      %v668 = vpop.f32.mrf.mxu0
      %v669 = vadd.f32 0.0, %v668
      %v670 = vpop.f32.mrf.mxu0
      %671 = vmatprep.mubr.bf16.mxu0 %v462
      %672 = vmatmul.mubr.bf16.gmra.mxu0 %v461
      %v673 = vpop.f32.mrf.mxu0
      %v674 = vadd.f32 0.0, %v673
      %v675 = vpop.f32.mrf.mxu0
      %v676 = vpop.f32.mrf.mxu0
      %v677 = vadd.f32 0.0, %v676
      %v678 = vpop.f32.mrf.mxu0
      %679 = vmatprep.mubr.bf16.mxu0 %v464
      %680 = vmatmul.mubr.bf16.gmra.mxu0 %v463
      %v681 = vpop.f32.mrf.mxu0
      %v682 = vadd.f32 0.0, %v681
      %v683 = vpop.f32.mrf.mxu0
      %v684 = vpop.f32.mrf.mxu0
      %v685 = vadd.f32 0.0, %v684
      %v686 = vpop.f32.mrf.mxu0
      %687 = vmatprep.mubr.bf16.mxu0 %v466
      %688 = vmatmul.mubr.bf16.gmra.mxu0 %v465
      %v689 = vpop.f32.mrf.mxu0
      %v690 = vadd.f32 0.0, %v689
      %v691 = vpop.f32.mrf.mxu0
      %v692 = vpop.f32.mrf.mxu0
      %v693 = vadd.f32 0.0, %v692
      %v694 = vpop.f32.mrf.mxu0
      %695 = vmatprep.mubr.bf16.mxu0 %v468
      %696 = vmatmul.mubr.bf16.gmra.mxu0 %v467
      %v697 = vpop.f32.mrf.mxu0
      %v698 = vadd.f32 0.0, %v697
      %v699 = vpop.f32.mrf.mxu0
      %v700 = vpop.f32.mrf.mxu0
      %v701 = vadd.f32 0.0, %v700
      %v702 = vpop.f32.mrf.mxu0
      %703 = vmatprep.mubr.bf16.mxu0 %v470
      %704 = vmatmul.mubr.bf16.gmra.mxu0 %v469
      %v705 = vpop.f32.mrf.mxu0
      %v706 = vadd.f32 0.0, %v705
      %v707 = vpop.f32.mrf.mxu0
      %v708 = vpop.f32.mrf.mxu0
      %v709 = vadd.f32 0.0, %v708
      %v710 = vpop.f32.mrf.mxu0
      %711 = vmatprep.mubr.bf16.mxu0 %v472
      %712 = vmatmul.mubr.bf16.gmra.mxu0 %v471
      %v713 = vpop.f32.mrf.mxu0
      %v714 = vadd.f32 0.0, %v713
      %v715 = vpop.f32.mrf.mxu0
      %v716 = vpop.f32.mrf.mxu0
      %v717 = vadd.f32 0.0, %v716
      %v718 = vpop.f32.mrf.mxu0
      %719 = vmatprep.mubr.bf16.mxu0 %v474
      %720 = vmatmul.mubr.bf16.gmra.mxu0 %v473
      %v721 = vpop.f32.mrf.mxu0
      %v722 = vadd.f32 0.0, %v721
      %v723 = vpop.f32.mrf.mxu0
      %v724 = vpop.f32.mrf.mxu0
      %v725 = vadd.f32 0.0, %v724
      %v726 = vpop.f32.mrf.mxu0
      %727 = vmatprep.mubr.bf16.mxu0 %v476
      %728 = vmatmul.mubr.bf16.gmra.mxu0 %v475
      %v729 = vpop.f32.mrf.mxu0
      %v730 = vadd.f32 0.0, %v729
      %v731 = vpop.f32.mrf.mxu0
      %v732 = vpop.f32.mrf.mxu0
      %v733 = vadd.f32 0.0, %v732
      %v734 = vpop.f32.mrf.mxu0
      %735 = vmatprep.mubr.bf16.mxu0 %v478
      %736 = vmatmul.mubr.bf16.gmra.mxu0 %v477
      %v737 = vpop.f32.mrf.mxu0
      %v738 = vadd.f32 0.0, %v737
      %v739 = vpop.f32.mrf.mxu0
      %v740 = vpop.f32.mrf.mxu0
      %v741 = vadd.f32 0.0, %v740
      %v742 = vpop.f32.mrf.mxu0
      %743 = vmatprep.mubr.bf16.mxu0 %v480
      %744 = vmatmul.mubr.bf16.gmra.mxu0 %v479
      %v745 = vpop.f32.mrf.mxu0
      %v746 = vadd.f32 0.0, %v745
      %v747 = vpop.f32.mrf.mxu0
      %v748 = vpop.f32.mrf.mxu0
      %v749 = vadd.f32 0.0, %v748
      %v750 = vpop.f32.mrf.mxu0
      %751 = vmatprep.mubr.bf16.mxu0 %v482
      %752 = vmatmul.mubr.bf16.gmra.mxu0 %v481
      %v753 = vpop.f32.mrf.mxu0
      %v754 = vadd.f32 0.0, %v753
      %v755 = vpop.f32.mrf.mxu0
      %v756 = vpop.f32.mrf.mxu0
      %v757 = vadd.f32 0.0, %v756
      %v758 = vpop.f32.mrf.mxu0
      %759 = vmatprep.mubr.bf16.mxu0 %v484
      %760 = vmatmul.mubr.bf16.gmra.mxu0 %v483
      %v761 = vpop.f32.mrf.mxu0
      %v762 = vadd.f32 0.0, %v761
      %v763 = vpop.f32.mrf.mxu0
      %v764 = vpop.f32.mrf.mxu0
      %v765 = vadd.f32 0.0, %v764
      %v766 = vpop.f32.mrf.mxu0
      %767 = vmatprep.mubr.bf16.mxu0 %v486
      %768 = vmatmul.mubr.bf16.gmra.mxu0 %v485
      %v769 = vpop.f32.mrf.mxu0
      %v770 = vadd.f32 0.0, %v769
      %v771 = vpop.f32.mrf.mxu0
      %v772 = vpop.f32.mrf.mxu0
      %v773 = vadd.f32 0.0, %v772
      %v774 = vpop.f32.mrf.mxu0
      %775 = vdwg.mxu0
      %v776 = vadd.f32 %v263, %v650
      %v777 = vadd.f32 %v264, %v653
      %v778 = vadd.f32 %v265, %v658
      %v779 = vadd.f32 %v266, %v661
      %v780 = vadd.f32 %v267, %v666
      %v781 = vadd.f32 %v268, %v669
      %v782 = vadd.f32 %v269, %v674
      %v783 = vadd.f32 %v270, %v677
      %v784 = vadd.f32 %v271, %v682
      %v785 = vadd.f32 %v272, %v685
      %v786 = vadd.f32 %v273, %v690
      %v787 = vadd.f32 %v274, %v693
      %v788 = vadd.f32 %v275, %v698
      %v789 = vadd.f32 %v276, %v701
      %v790 = vadd.f32 %v277, %v706
      %v791 = vadd.f32 %v278, %v709
      %v792 = vadd.f32 %v279, %v714
      %v793 = vadd.f32 %v280, %v717
      %v794 = vadd.f32 %v281, %v722
      %v795 = vadd.f32 %v282, %v725
      %v796 = vadd.f32 %v283, %v730
      %v797 = vadd.f32 %v284, %v733
      %v798 = vadd.f32 %v285, %v738
      %v799 = vadd.f32 %v286, %v741
      %v800 = vadd.f32 %v287, %v746
      %v801 = vadd.f32 %v288, %v749
      %v802 = vadd.f32 %v289, %v754
      %v803 = vadd.f32 %v290, %v757
      %v804 = vadd.f32 %v291, %v762
      %v805 = vadd.f32 %v292, %v765
      %v806 = vadd.f32 %v293, %v770
      %v807 = vadd.f32 %v294, %v773
      %808 = vst [vmem:[#allocation2] sm:$0xff] %v776
      %809 = vst [vmem:[#allocation2 + $0x8] sm:$0xff] %v777
      %810 = vst [vmem:[#allocation2 + $0x10] sm:$0xff] %v778
      %811 = vst [vmem:[#allocation2 + $0x18] sm:$0xff] %v779
      %812 = vst [vmem:[#allocation2 + $0x20] sm:$0xff] %v780
      %813 = vst [vmem:[#allocation2 + $0x28] sm:$0xff] %v781
      %814 = vst [vmem:[#allocation2 + $0x30] sm:$0xff] %v782
      %815 = vst [vmem:[#allocation2 + $0x38] sm:$0xff] %v783
      %816 = vst [vmem:[#allocation2 + $0x40] sm:$0xff] %v784
      %817 = vst [vmem:[#allocation2 + $0x48] sm:$0xff] %v785
      %818 = vst [vmem:[#allocation2 + $0x50] sm:$0xff] %v786
      %819 = vst [vmem:[#allocation2 + $0x58] sm:$0xff] %v787
      %820 = vst [vmem:[#allocation2 + $0x60] sm:$0xff] %v788
      %821 = vst [vmem:[#allocation2 + $0x68] sm:$0xff] %v789
      %822 = vst [vmem:[#allocation2 + $0x70] sm:$0xff] %v790
      %823 = vst [vmem:[#allocation2 + $0x78] sm:$0xff] %v791
      %824 = vst [vmem:[#allocation2 + $0x80] sm:$0xff] %v792
      %825 = vst [vmem:[#allocation2 + $0x88] sm:$0xff] %v793
      %826 = vst [vmem:[#allocation2 + $0x90] sm:$0xff] %v794
      %827 = vst [vmem:[#allocation2 + $0x98] sm:$0xff] %v795
      %828 = vst [vmem:[#allocation2 + $0xa0] sm:$0xff] %v796
      %829 = vst [vmem:[#allocation2 + $0xa8] sm:$0xff] %v797
      %830 = vst [vmem:[#allocation2 + $0xb0] sm:$0xff] %v798
      %831 = vst [vmem:[#allocation2 + $0xb8] sm:$0xff] %v799
      %832 = vst [vmem:[#allocation2 + $0xc0] sm:$0xff] %v800
      %833 = vst [vmem:[#allocation2 + $0xc8] sm:$0xff] %v801
      %834 = vst [vmem:[#allocation2 + $0xd0] sm:$0xff] %v802
      %835 = vst [vmem:[#allocation2 + $0xd8] sm:$0xff] %v803
      %836 = vst [vmem:[#allocation2 + $0xe0] sm:$0xff] %v804
      %837 = vst [vmem:[#allocation2 + $0xe8] sm:$0xff] %v805
      %838 = vst [vmem:[#allocation2 + $0xf0] sm:$0xff] %v806
      %839 = vst [vmem:[#allocation2 + $0xf8] sm:$0xff] %v807
      // Predicated region
      $region33: #{pallas_matmul.1} parent=27 // pred_check
        %p840 = pneg %p227
      $region34: #{pallas_matmul.1} parent=27 // pred_check_branch
        %842 = sbr.rel (%p840) target = $region36
      $region35: #{pallas_matmul.1} parent=27 // pred_region
        %v843 = vld [vmem:[#allocation2] sm:$0xff]
        %v844 = vld [vmem:[#allocation2 + $0x8] sm:$0xff]
        %v845 = vld [vmem:[#allocation2 + $0x10] sm:$0xff]
        %v846 = vld [vmem:[#allocation2 + $0x18] sm:$0xff]
        %v847 = vld [vmem:[#allocation2 + $0x20] sm:$0xff]
        %v848 = vld [vmem:[#allocation2 + $0x28] sm:$0xff]
        %v849 = vld [vmem:[#allocation2 + $0x30] sm:$0xff]
        %v850 = vld [vmem:[#allocation2 + $0x38] sm:$0xff]
        %v851 = vld [vmem:[#allocation2 + $0x40] sm:$0xff]
        %v852 = vld [vmem:[#allocation2 + $0x48] sm:$0xff]
        %v853 = vld [vmem:[#allocation2 + $0x50] sm:$0xff]
        %v854 = vld [vmem:[#allocation2 + $0x58] sm:$0xff]
        %v855 = vld [vmem:[#allocation2 + $0x60] sm:$0xff]
        %v856 = vld [vmem:[#allocation2 + $0x68] sm:$0xff]
        %v857 = vld [vmem:[#allocation2 + $0x70] sm:$0xff]
        %v858 = vld [vmem:[#allocation2 + $0x78] sm:$0xff]
        %v859 = vld [vmem:[#allocation2 + $0x80] sm:$0xff]
        %v860 = vld [vmem:[#allocation2 + $0x88] sm:$0xff]
        %v861 = vld [vmem:[#allocation2 + $0x90] sm:$0xff]
        %v862 = vld [vmem:[#allocation2 + $0x98] sm:$0xff]
        %v863 = vld [vmem:[#allocation2 + $0xa0] sm:$0xff]
        %v864 = vld [vmem:[#allocation2 + $0xa8] sm:$0xff]
        %v865 = vld [vmem:[#allocation2 + $0xb0] sm:$0xff]
        %v866 = vld [vmem:[#allocation2 + $0xb8] sm:$0xff]
        %v867 = vld [vmem:[#allocation2 + $0xc0] sm:$0xff]
        %v868 = vld [vmem:[#allocation2 + $0xc8] sm:$0xff]
        %v869 = vld [vmem:[#allocation2 + $0xd0] sm:$0xff]
        %v870 = vld [vmem:[#allocation2 + $0xd8] sm:$0xff]
        %v871 = vld [vmem:[#allocation2 + $0xe0] sm:$0xff]
        %v872 = vld [vmem:[#allocation2 + $0xe8] sm:$0xff]
        %v873 = vld [vmem:[#allocation2 + $0xf0] sm:$0xff]
        %v874 = vld [vmem:[#allocation2 + $0xf8] sm:$0xff]
        %875 = vst [vmem:[%s224] sm:$0xff] %v843
        %876 = vst [vmem:[%s224 + $0x8] sm:$0xff] %v844
        %877 = vst [vmem:[%s224 + $0x10] sm:$0xff] %v845
        %878 = vst [vmem:[%s224 + $0x18] sm:$0xff] %v846
        %879 = vst [vmem:[%s224 + $0x20] sm:$0xff] %v847
        %880 = vst [vmem:[%s224 + $0x28] sm:$0xff] %v848
        %881 = vst [vmem:[%s224 + $0x30] sm:$0xff] %v849
        %882 = vst [vmem:[%s224 + $0x38] sm:$0xff] %v850
        %883 = vst [vmem:[%s224 + $0x40] sm:$0xff] %v851
        %884 = vst [vmem:[%s224 + $0x48] sm:$0xff] %v852
        %885 = vst [vmem:[%s224 + $0x50] sm:$0xff] %v853
        %886 = vst [vmem:[%s224 + $0x58] sm:$0xff] %v854
        %887 = vst [vmem:[%s224 + $0x60] sm:$0xff] %v855
        %888 = vst [vmem:[%s224 + $0x68] sm:$0xff] %v856
        %889 = vst [vmem:[%s224 + $0x70] sm:$0xff] %v857
        %890 = vst [vmem:[%s224 + $0x78] sm:$0xff] %v858
        %891 = vst [vmem:[%s224 + $0x80] sm:$0xff] %v859
        %892 = vst [vmem:[%s224 + $0x88] sm:$0xff] %v860
        %893 = vst [vmem:[%s224 + $0x90] sm:$0xff] %v861
        %894 = vst [vmem:[%s224 + $0x98] sm:$0xff] %v862
        %895 = vst [vmem:[%s224 + $0xa0] sm:$0xff] %v863
        %896 = vst [vmem:[%s224 + $0xa8] sm:$0xff] %v864
        %897 = vst [vmem:[%s224 + $0xb0] sm:$0xff] %v865
        %898 = vst [vmem:[%s224 + $0xb8] sm:$0xff] %v866
        %899 = vst [vmem:[%s224 + $0xc0] sm:$0xff] %v867
        %900 = vst [vmem:[%s224 + $0xc8] sm:$0xff] %v868
        %901 = vst [vmem:[%s224 + $0xd0] sm:$0xff] %v869
        %902 = vst [vmem:[%s224 + $0xd8] sm:$0xff] %v870
        %903 = vst [vmem:[%s224 + $0xe0] sm:$0xff] %v871
        %904 = vst [vmem:[%s224 + $0xe8] sm:$0xff] %v872
        %905 = vst [vmem:[%s224 + $0xf0] sm:$0xff] %v873
        %906 = vst [vmem:[%s224 + $0xf8] sm:$0xff] %v874
      $region36: #{pallas_matmul.1} parent=27 // pred_fallthru
        _
      %s907 = smul.u32 32, %s18
      %p908 = scmp.lt.s32.totalorder %s907, 63
      %s909 = scalar_select %p908, %s907, 63
      %p910 = scmp.lt.s32.totalorder %s19, 0
      %s911 = scalar_select %p910, %s19, 0
      %s912 = sadd.s32 %s911, %s909
      %s913 = smul.addr %s912, 8
      %s914 = scalar_lea.vmem %s2, %s913
      // Predicated region
      $region37: #{pallas_matmul.1} parent=27 // pred_check
        %p915 = pneg %p108
      $region38: #{pallas_matmul.1} parent=27 // pred_check_branch
        %917 = sbr.rel (%p915) target = $region40
      $region39: #{pallas_matmul.1} parent=27 // pred_region
        %s918 = smul.u32 32, %s18
      $region40: #{pallas_matmul.1} parent=27 // pred_fallthru
        _
    $region28: #{pallas_matmul.1} parent=5 // pred_fallthru
      _
    %p919 = scmp.le.s32.totalorder 2, %s8
    // Predicated region
    $region41: #{pallas_matmul.1} parent=5 // pred_check
      %p920 = pneg %p919
    $region42: #{pallas_matmul.1} parent=5 // pred_check_branch
      %922 = sbr.rel (%p920) target = $region44
    $region43: #{pallas_matmul.1} parent=5 // pred_region
      %s923 = ssub.s32 %s8, 2
      // Predicated region
      $region45: #{pallas_matmul.1} parent=43 // pred_check
        %p924 = pneg %p114
      $region46: #{pallas_matmul.1} parent=43 // pred_check_branch
        %926 = sbr.rel (%p924) target = $region48
      $region47: #{pallas_matmul.1} parent=43 // pred_region
        %s927 = smul.u32 32, %s21
        %p928 = scmp.lt.s32.totalorder %s927, 63
        %s929 = scalar_select %p928, %s927, 63
        %p930 = scmp.lt.s32.totalorder %s22, 0
        %s931 = scalar_select %p930, %s22, 0
        %s932 = sadd.s32 %s931, %s929
        %s933 = smul.addr %s932, 8
        %s934 = scalar_lea.vmem %s2, %s933
      $region48: #{pallas_matmul.1} parent=43 // pred_fallthru
        _
    $region44: #{pallas_matmul.1} parent=5 // pred_fallthru
      _
  $region6: #{pallas_matmul.1} parent=0 // loop_footer
    %s12 = sadd.s32 1, %s8
  $region7: #{pallas_matmul.1} parent=0 // loop_footer_branch
    %7 = sbr.rel target = $region3
  $region8: #{pallas_matmul.1} parent=0 // loop_exit
    _

</llo_original>
